<compile_context>
chip_gen: v6e
topology: v6e:2x2x1
jax: 0.10.0
libtpu: 0.0.40
codegen_flags: <defaults>
</compile_context>

<pallas_src>
import functools

import jax
import jax.numpy as jnp
from jax import lax
from jax.experimental import pallas as pl
from jax.experimental.pallas import tpu as pltpu


def _round_up(v, m):
    return ((v + m - 1) // m) * m


def _vmem_limit_bytes():
    # ~3/4 of physical VMEM: v5e/v6e (128 MiB) -> 96 MiB, v7x (64 MiB) -> 48 MiB.
    try:
        cap = int(pltpu.get_tpu_info().vmem_capacity_bytes)
        return int(min(cap * 3 // 4, 100 * 1024 * 1024))
    except Exception:
        return 48 * 1024 * 1024


def dkvb_kernel(x_ref, w_ref, vbd_ref, out_ref, *, num_heads, codes_padded):
    # x_ref:   (T, D+1)         token tile, augmented with a constant-1 column
    # w_ref:   (D+1, H*Mp)      rows 0..D-1: -2 * proj_h @ codebook_h^T
    #                           row  D     : ||c||^2  (BIG for pad codes)
    # vbd_ref: (H*Mp, OUT_PAD)  block-diagonal per-head values table (lane padded)
    # out_ref: (T, OUT_PAD)     OUT_PAD multiple of 128 -> unmasked full-lane store
    H, Mp = num_heads, codes_padded
    T = x_ref.shape[0]

    # One fused MXU matmul: projection + per-head scores, -2 scale and ||c||^2
    # bias all folded into W.  Result is the squared-L2 distance up to the
    # argmin-invariant per-row ||x||^2 term.
    dist = jnp.dot(x_ref[...], w_ref[...], preferred_element_type=jnp.float32)  # (T, H*Mp)

    # Per-head argmin on static 128-aligned lane slices (no full-width masking,
    # no per-head iota/mask rebuilds); first-index tie-break; elementwise math
    # stays in f32/int32 (VPU-friendly on v5e as well).
    lane = lax.broadcasted_iota(jnp.int32, (T, Mp), 1)                # shared across heads
    one_hots = []
    for h in range(H):                                                # static, small H
        d_h = dist[:, h * Mp:(h + 1) * Mp]                            # (T, Mp)
        min_h = jnp.min(d_h, axis=-1, keepdims=True)                  # (T, 1)
        cand = jnp.where(d_h <= min_h, lane, Mp)                      # sentinel = Mp
        idx_h = jnp.min(cand, axis=-1, keepdims=True)                 # first index of min
        one_hots.append((lane == idx_h).astype(vbd_ref.dtype))        # (T, Mp)
    # Lane-aligned concat: every piece is a whole number of 128-lane vregs.
    one_hot = jnp.concatenate(one_hots, axis=-1)                      # (T, H*Mp)

    # Exact gather via a single matmul against the block-diagonal values table
    # (kept in values.dtype so gathered rows are bit-exact), then one
    # lane-dense full-width store.
    # TODO(synk): for H >~ 4 switch to per-head one_hot_h @ values[h] matmuls
    # to drop the (H-1)/H zero-block MACs and the H x vbd VMEM footprint.
    mem = jnp.dot(one_hot, vbd_ref[...], preferred_element_type=jnp.float32)   # (T, OUT_PAD)
    out_ref[...] = mem.astype(out_ref.dtype)


def make_dkvb(rand_proj, codebook, values, *,
              score_dtype=jnp.bfloat16, token_block=512):
    """Build the fused eval-time tables ONCE and return a jitted forward fn.

    score_dtype=bfloat16 (default) runs the distance matmul at the bf16 MXU
    rate and halves x/W DMA bytes; only near-exact argmin ties can differ from
    the f32 reference.  Pass jnp.float32 for bit-faithful index selection.
    """
    D, E = rand_proj.shape
    H, M, dh = codebook.shape
    dm = values.shape[2]
    assert H * dh == E and values.shape[:2] == (H, M)

    Mp = _round_up(M, 128)              # per-head lane slices sit on vreg boundaries
    out_dim = H * dm
    out_pad = _round_up(out_dim, 128)   # lane-dense output store
    BIG = jnp.float32(1e30)             # distance bias for pad codes (never selected)

    # ---- one-time precompute of frozen eval-time parameters -----------------
    proj = rand_proj.astype(jnp.float32)
    cb = codebook.astype(jnp.float32)
    cols = []
    for h in range(H):
        wh = -2.0 * (proj[:, h * dh:(h + 1) * dh] @ cb[h].T)          # (D, M)
        wh = jnp.pad(wh, ((0, 0), (0, Mp - M)))                       # (D, Mp)
        c2 = jnp.sum(cb[h] * cb[h], axis=-1)                          # (M,)
        bias = jnp.concatenate([c2, jnp.full((Mp - M,), BIG, jnp.float32)])
        cols.append(jnp.concatenate([wh, bias[None, :]], axis=0))     # (D+1, Mp)
    w_aug = jnp.concatenate(cols, axis=1).astype(score_dtype)         # (D+1, H*Mp)

    vbd = jnp.zeros((H * Mp, out_pad), values.dtype)                  # block-diag values
    for h in range(H):
        vbd = vbd.at[h * Mp:h * Mp + M, h * dm:(h + 1) * dm].set(values[h])

    out_dtype = values.dtype
    kernel = functools.partial(dkvb_kernel, num_heads=H, codes_padded=Mp)
    vmem_limit = _vmem_limit_bytes()

    @jax.jit
    def forward(x):
        B, N, Dx = x.shape
        assert Dx == D
        BN = B * N

        # Token tile: multiple of 8 sublanes; sweep 512-1024 per generation.
        # Cap so the grid has >= 2 steps (v7x shards the "parallel" axis
        # across its 2 TensorCores).
        T = min(token_block, BN)
        if BN > 8:
            T = min(T, -(-BN // 2))
        T = max(8, _round_up(T, 8))
        BN_pad = _round_up(BN, T)

        x2d = x.reshape(BN, D).astype(jnp.float32)
        if BN_pad != BN:
            x2d = jnp.pad(x2d, ((0, BN_pad - BN), (0, 0)))
        ones = jnp.ones((BN_pad, 1), jnp.float32)
        x_aug = jnp.concatenate([x2d, ones], axis=1).astype(score_dtype)   # (BN_pad, D+1)

        out2d = pl.pallas_call(
            kernel,
            out_shape=jax.ShapeDtypeStruct((BN_pad, out_pad), out_dtype),
            grid_spec=pltpu.PrefetchScalarGridSpec(
                num_scalar_prefetch=0,
                grid=(BN_pad // T,),
                in_specs=[
                    pl.BlockSpec((T, D + 1), lambda i: (i, 0)),         # token tile
                    pl.BlockSpec((D + 1, H * Mp), lambda i: (0, 0)),    # fused W (grid-invariant)
                    pl.BlockSpec((H * Mp, out_pad), lambda i: (0, 0)),  # block-diag values
                ],
                out_specs=pl.BlockSpec((T, out_pad), lambda i: (i, 0)),
            ),
            compiler_params=pltpu.CompilerParams(
                dimension_semantics=("parallel",),
                vmem_limit_bytes=vmem_limit,
            ),
        )(x_aug, w_aug, vbd)

        # TODO(synk): if W+vbd ever exceed v7x's 64 MiB (very large codebooks),
        # add an "arbitrary" grid axis over code chunks with a running
        # (min, argmin) carried in VMEM scratch.
        return out2d[:BN, :out_dim].reshape(B, N, out_dim)

    return forward


def dkvb_reference(x, rand_proj, codebook, values):
    """Pure-JAX reference mirroring the PyTorch module's math order."""
    xp = jnp.einsum('bnd,de->bne', x, rand_proj)
    H, M, dh = codebook.shape
    outs = []
    for h in range(H):
        xh = xp[..., h * dh:(h + 1) * dh]
        cb = codebook[h]
        dist = (jnp.sum(xh * xh, -1, keepdims=True)
                - 2.0 * jnp.einsum('bnd,md->bnm', xh, cb)
                + jnp.sum(cb * cb, -1)[None, None, :])
        idx = jnp.argmin(dist, axis=-1)             # (B, N)
        outs.append(values[h][idx])                 # (B, N, dm)
    return jnp.concatenate(outs, axis=-1)


if __name__ == "__main__":
    def make_inputs(key, B, N, dim, embed_dim, heads, num_memories, dim_memory):
        kx, kp, kc, kv = jax.random.split(key, 4)
        x = jax.random.normal(kx, (B, N, dim), jnp.float32)
        xavier_std = (2.0 / (dim + embed_dim)) ** 0.5   # nn.init.xavier_normal_
        rand_proj = jax.random.normal(kp, (dim, embed_dim), jnp.float32) * xavier_std
        dh = embed_dim // heads
        codebook = jax.random.normal(kc, (heads, num_memories, dh), jnp.float32)
        values = jax.random.normal(kv, (heads, num_memories, dim_memory), jnp.float32)
        return x, rand_proj, codebook, values

    key = jax.random.PRNGKey(0)
    k1, k2 = jax.random.split(key)

    # module config: dim=32, embed_dim=32, num_memory_codebooks=2,
    # num_memories=64, dim_memory = embed_dim // heads = 16
    x, rp, cb, vals = make_inputs(k1, B=2, N=8, dim=32, embed_dim=32,
                                  heads=2, num_memories=64, dim_memory=16)
    fwd_f32 = make_dkvb(rp, cb, vals, score_dtype=jnp.float32)
    out = jax.block_until_ready(fwd_f32(x))
    ref = dkvb_reference(x, rp, cb, vals)
    assert out.shape == (2, 8, 32)
    assert out.dtype == vals.dtype
    assert jnp.allclose(out, ref, atol=1e-4, rtol=1e-4), "mismatch vs reference (case 1)"

    # Second case exercises token tiling + row padding (B*N = 300 -> 2 tiles of 152).
    x2, rp2, cb2, vals2 = make_inputs(k2, B=3, N=100, dim=32, embed_dim=32,
                                      heads=2, num_memories=64, dim_memory=16)
    fwd2_f32 = make_dkvb(rp2, cb2, vals2, score_dtype=jnp.float32)
    out2 = jax.block_until_ready(fwd2_f32(x2))
    ref2 = dkvb_reference(x2, rp2, cb2, vals2)
    assert out2.shape == (3, 100, 32)
    assert jnp.allclose(out2, ref2, atol=1e-4, rtol=1e-4), "mismatch vs reference (case 2)"

    # Default bf16 score path (bf16 MXU rate on v5e/v6e/v7x); the value gather
    # stays exact in values.dtype, so only near-exact argmin ties can differ
    # from the f32 reference -> sanity checked only.
    fwd_bf16 = make_dkvb(rp2, cb2, vals2)
    out_bf16 = jax.block_until_ready(fwd_bf16(x2))
    assert out_bf16.shape == (3, 100, 32)
    assert bool(jnp.all(jnp.isfinite(out_bf16)))

    # TODO(synk): VectorQuantize training-time state (commit_loss, EMA codebook
    # updates) and the eval-time print(memory_indices.unique()) debug
    # side-effect are not part of the returned forward value and are omitted.
    print("KERNEL_OK")
</pallas_src>

<mosaic_0001>
module attributes {stable_mosaic.version = 11 : i64} {
  func.func @dkvb_kernel(%arg0: i32, %arg1: memref<8x33xf32, #tpu.memory_space<vmem>>, %arg2: memref<33x256xf32, #tpu.memory_space<vmem>>, %arg3: memref<256x128xf32, #tpu.memory_space<vmem>>, %arg4: memref<8x128xf32, #tpu.memory_space<vmem>>) attributes {dimension_semantics = [#tpu.dimension_semantics<parallel>], iteration_bounds = array<i64: 2>, scalar_prefetch = 0 : i64, scratch_operands = 0 : i64, tpu.core_type = #tpu.core_type<tc>, window_params = [{transform_indices = @transform_0, window_bounds = array<i64: 8, 33>}, {pipeline_mode = #tpu.pipeline_mode<synchronous>, transform_indices = @transform_1, window_bounds = array<i64: 33, 256>}, {pipeline_mode = #tpu.pipeline_mode<synchronous>, transform_indices = @transform_2, window_bounds = array<i64: 256, 128>}, {transform_indices = @transform_3, window_bounds = array<i64: 8, 128>}]} {
    %c0 = arith.constant 0 : index
    %c0_0 = arith.constant 0 : index
    %0 = vector.load %arg1[%c0, %c0_0] : memref<8x33xf32, #tpu.memory_space<vmem>>, vector<8x33xf32>
    %c0_1 = arith.constant 0 : index
    %c0_2 = arith.constant 0 : index
    %1 = vector.load %arg2[%c0_1, %c0_2] : memref<33x256xf32, #tpu.memory_space<vmem>>, vector<33x256xf32>
    %cst = arith.constant dense<0.000000e+00> : vector<8x256xf32>
    %2 = tpu.matmul %0, %1, %cst {dimension_numbers = #tpu.dot_dimension_numbers<[1], [0], [0], [1], [0, 0, 1, 1], [], []>} : vector<8x33xf32>, vector<33x256xf32>, vector<8x256xf32> -> vector<8x256xf32>
    %3 = tpu.iota {dimensions = array<i32: 1>} : vector<8x128xi32>
    %4 = vector.extract_strided_slice %2 {offsets = [0, 0], sizes = [8, 128], strides = [1, 1]} : vector<8x256xf32> to vector<8x128xf32>
    %cst_3 = arith.constant dense<0x7F800000> : vector<8xf32>
    %5 = vector.multi_reduction <minimumf>, %4, %cst_3 [1] : vector<8x128xf32> to vector<8xf32>
    %6 = vector.shape_cast %5 : vector<8xf32> to vector<8x1xf32>
    %7 = vector.broadcast %6 : vector<8x1xf32> to vector<8x128xf32>
    %8 = arith.cmpf ole, %4, %7 : vector<8x128xf32>
    %c128_i32 = arith.constant 128 : i32
    %9 = vector.broadcast %c128_i32 : i32 to vector<8x128xi32>
    %10 = arith.select %8, %3, %9 : vector<8x128xi1>, vector<8x128xi32>
    %cst_4 = arith.constant dense<2147483647> : vector<8xi32>
    %11 = vector.multi_reduction <minsi>, %10, %cst_4 [1] : vector<8x128xi32> to vector<8xi32>
    %12 = vector.shape_cast %11 : vector<8xi32> to vector<8x1xi32>
    %13 = vector.broadcast %12 : vector<8x1xi32> to vector<8x128xi32>
    %14 = arith.cmpi eq, %3, %13 : vector<8x128xi32>
    %15 = arith.extui %14 : vector<8x128xi1> to vector<8x128xi32>
    %16 = arith.sitofp %15 : vector<8x128xi32> to vector<8x128xf32>
    %17 = vector.extract_strided_slice %2 {offsets = [0, 128], sizes = [8, 128], strides = [1, 1]} : vector<8x256xf32> to vector<8x128xf32>
    %cst_5 = arith.constant dense<0x7F800000> : vector<8xf32>
    %18 = vector.multi_reduction <minimumf>, %17, %cst_5 [1] : vector<8x128xf32> to vector<8xf32>
    %19 = vector.shape_cast %18 : vector<8xf32> to vector<8x1xf32>
    %20 = vector.broadcast %19 : vector<8x1xf32> to vector<8x128xf32>
    %21 = arith.cmpf ole, %17, %20 : vector<8x128xf32>
    %c128_i32_6 = arith.constant 128 : i32
    %22 = vector.broadcast %c128_i32_6 : i32 to vector<8x128xi32>
    %23 = arith.select %21, %3, %22 : vector<8x128xi1>, vector<8x128xi32>
    %cst_7 = arith.constant dense<2147483647> : vector<8xi32>
    %24 = vector.multi_reduction <minsi>, %23, %cst_7 [1] : vector<8x128xi32> to vector<8xi32>
    %25 = vector.shape_cast %24 : vector<8xi32> to vector<8x1xi32>
    %26 = vector.broadcast %25 : vector<8x1xi32> to vector<8x128xi32>
    %27 = arith.cmpi eq, %3, %26 : vector<8x128xi32>
    %28 = arith.extui %27 : vector<8x128xi1> to vector<8x128xi32>
    %29 = arith.sitofp %28 : vector<8x128xi32> to vector<8x128xf32>
    %30 = tpu.concatenate %16, %29 in 1 : vector<8x128xf32>, vector<8x128xf32> -> vector<8x256xf32>
    %c0_8 = arith.constant 0 : index
    %c0_9 = arith.constant 0 : index
    %31 = vector.load %arg3[%c0_8, %c0_9] : memref<256x128xf32, #tpu.memory_space<vmem>>, vector<256x128xf32>
    %cst_10 = arith.constant dense<0.000000e+00> : vector<8x128xf32>
    %32 = tpu.matmul %30, %31, %cst_10 {dimension_numbers = #tpu.dot_dimension_numbers<[1], [0], [0], [1], [0, 0, 1, 1], [], []>} : vector<8x256xf32>, vector<256x128xf32>, vector<8x128xf32> -> vector<8x128xf32>
    %c0_11 = arith.constant 0 : index
    %c0_12 = arith.constant 0 : index
    %33 = vector.load %arg4[%c0_11, %c0_12] : memref<8x128xf32, #tpu.memory_space<vmem>>, vector<8x128xf32>
    tpu.vector_store %arg4[%c0_11, %c0_12], %32 {strides = array<i32>} : memref<8x128xf32, #tpu.memory_space<vmem>>, vector<8x128xf32>,
    return
  }
  func.func @transform_0(%arg0: i32) -> (i32, i32) {
    %c0_i32 = arith.constant 0 : i32
    %c0_i32_0 = arith.constant 0 : i32
    return %arg0, %c0_i32 : i32, i32
  }
  func.func @transform_1(%arg0: i32) -> (i32, i32) {
    %c0_i32 = arith.constant 0 : i32
    %c0_i32_0 = arith.constant 0 : i32
    %c0_i32_1 = arith.constant 0 : i32
    return %c0_i32, %c0_i32_0 : i32, i32
  }
  func.func @transform_2(%arg0: i32) -> (i32, i32) {
    %c0_i32 = arith.constant 0 : i32
    %c0_i32_0 = arith.constant 0 : i32
    %c0_i32_1 = arith.constant 0 : i32
    return %c0_i32, %c0_i32_0 : i32, i32
  }
  func.func @transform_3(%arg0: i32) -> (i32, i32) {
    %c0_i32 = arith.constant 0 : i32
    %c0_i32_0 = arith.constant 0 : i32
    return %arg0, %c0_i32 : i32, i32
  }
}

</mosaic_0001>

<llo_original>
// kernel: forward.1
$region0: #{forward.1}
  #allocation0 [shape = 'u32[]', space=smem, size = 0x4, offset = 0x4, fixed_abs, tag = 'smem constant byte address 0x4 - core index']
  #allocation1 [shape = 'u32[144,128]{1,0:T(1,128)}', space=vmem, size = 0x12000, scoped, tag = 'internal scratch']
  %s0 = inlined_call_operand.vmem [shape: f32[16,33], index: 0, kind: input, shape index: {}]
  %s1 = inlined_call_operand.hbm [shape: f32[33,256], index: 1, kind: input, shape index: {}]
  %s2 = inlined_call_operand.hbm [shape: f32[256,128], index: 2, kind: input, shape index: {}]
  %s3 = inlined_call_operand.vmem [shape: f32[16,128], index: 3, kind: output, shape index: {}]
  %s4 = sld [smem:[#allocation0]]
  $region53: #{forward.1} parent=0
    _
  %s6 = ssub.s32 1, %s4
  %s7 = scalar_select 0, %s6, %s4
  $region1: #{forward.1} parent=0
    #allocation2 [shape = 'u8[40960]{0}', space=vmem, size = 0xa000, scoped, tag = 'input window, operand 1, single buffered']
    #allocation3 [shape = 's32[2]{0}', space=sflag, size = 0x8, scoped, tag = 'scoped memory for forward.1']
    #allocation4 [shape = 'u8[131072]{0}', space=vmem, size = 0x20000, scoped, tag = 'input window, operand 2, single buffered']
    #allocation5 [shape = 's32[1]{0}', space=sflag, size = 0x4, scoped, tag = 'scoped memory for forward.1']
    %8 = vsyncpa [#allocation3], 0
    %9 = vsyncpa [#allocation5], 0
    loop: start=0, step=1, limit=4
    $region2: #{forward.1} parent=1 // loop_pre_header
      _
    $region3: #{forward.1} parent=1 // loop_header
      %s11 = sphi 0, %s15
      %p12 = scmp.ge.s32.totalorder %s11, 4
      %s21 = sphi 0, %s23
      %s24 = sphi 0, %s21
      %s25 = sphi 0, %s24
      %s41 = sphi 0, %s25
      %s45 = sphi 0, %s45
      %s47 = sphi 0, %s45
      %s48 = sphi 0, %s47
      %s62 = sphi 0, %s48
      %s66 = sphi 0, %s66
      %s68 = sphi 0, %s66
      %s69 = sphi 0, %s68
      %s83 = sphi 0, %s69
      %s89 = sphi 0, %s91
      %s92 = sphi 0, %s89
      %s93 = sphi 0, %s92
      %s109 = sphi 0, %s93
    $region4: #{forward.1} parent=1 // loop_header_branch
      %14 = sbr.rel (%p12) target = $region8
    $region5: #{forward.1} parent=1 // loop_body
      %s16 = ssub.s32 %s11, 1
      %s17 = ssub.s32 %s11, 2
      %s18 = sadd.s32 %s11, 1
      %s19 = ssub.s32 %s11, %s18
      %p20 = scmp.eq.s32.totalorder %s19, 0
      %s22 = sadd.s32 %s21, 1
      %s23 = scalar_select %p20, %s21, %s22
      %p26 = pneg %p20
      %p27 = scmp.eq.s32.totalorder %s11, 1
      %p28 = por %p26, %p27
      %p29 = scmp.ne.s32.totalorder %s21, %s24
      %p30 = scmp.eq.s32.totalorder %s11, 0
      %p31 = por %p29, %p30
      %p32 = scmp.ne.s32.totalorder %s21, %s24
      %p33 = scmp.eq.s32.totalorder %s16, 1
      %p34 = por %p32, %p33
      %p35 = scmp.ne.s32.totalorder %s24, %s25
      %p36 = scmp.eq.s32.totalorder %s16, 0
      %p37 = por %p35, %p36
      %p38 = scmp.ne.s32.totalorder %s24, %s25
      %p39 = scmp.eq.s32.totalorder %s17, 1
      %p40 = por %p38, %p39
      %p42 = scmp.ne.s32.totalorder %s25, %s41
      %p43 = scmp.eq.s32.totalorder %s17, 0
      %p44 = por %p42, %p43
      %s46 = sadd.s32 %s45, 1
      %p49 = scmp.eq.s32.totalorder %s11, 1
      %p50 = scmp.ne.s32.totalorder %s45, %s47
      %p51 = scmp.eq.s32.totalorder %s11, 0
      %p52 = por %p50, %p51
      %p53 = scmp.ne.s32.totalorder %s45, %s47
      %p54 = scmp.eq.s32.totalorder %s16, 1
      %p55 = por %p53, %p54
      %p56 = scmp.ne.s32.totalorder %s47, %s48
      %p57 = scmp.eq.s32.totalorder %s16, 0
      %p58 = por %p56, %p57
      %p59 = scmp.ne.s32.totalorder %s47, %s48
      %p60 = scmp.eq.s32.totalorder %s17, 1
      %p61 = por %p59, %p60
      %p63 = scmp.ne.s32.totalorder %s48, %s62
      %p64 = scmp.eq.s32.totalorder %s17, 0
      %p65 = por %p63, %p64
      %s67 = sadd.s32 %s66, 1
      %p70 = scmp.eq.s32.totalorder %s11, 1
      %p71 = scmp.ne.s32.totalorder %s66, %s68
      %p72 = scmp.eq.s32.totalorder %s11, 0
      %p73 = por %p71, %p72
      %p74 = scmp.ne.s32.totalorder %s66, %s68
      %p75 = scmp.eq.s32.totalorder %s16, 1
      %p76 = por %p74, %p75
      %p77 = scmp.ne.s32.totalorder %s68, %s69
      %p78 = scmp.eq.s32.totalorder %s16, 0
      %p79 = por %p77, %p78
      %p80 = scmp.ne.s32.totalorder %s68, %s69
      %p81 = scmp.eq.s32.totalorder %s17, 1
      %p82 = por %p80, %p81
      %p84 = scmp.ne.s32.totalorder %s69, %s83
      %p85 = scmp.eq.s32.totalorder %s17, 0
      %p86 = por %p84, %p85
      %s87 = ssub.s32 %s11, %s18
      %p88 = scmp.eq.s32.totalorder %s87, 0
      %s90 = sadd.s32 %s89, 1
      %s91 = scalar_select %p88, %s89, %s90
      %p94 = pneg %p88
      %p95 = scmp.eq.s32.totalorder %s11, 1
      %p96 = por %p94, %p95
      %p97 = scmp.ne.s32.totalorder %s89, %s92
      %p98 = scmp.eq.s32.totalorder %s11, 0
      %p99 = por %p97, %p98
      %p100 = scmp.ne.s32.totalorder %s89, %s92
      %p101 = scmp.eq.s32.totalorder %s16, 1
      %p102 = por %p100, %p101
      %p103 = scmp.ne.s32.totalorder %s92, %s93
      %p104 = scmp.eq.s32.totalorder %s16, 0
      %p105 = por %p103, %p104
      %p106 = scmp.ne.s32.totalorder %s92, %s93
      %p107 = scmp.eq.s32.totalorder %s17, 1
      %p108 = por %p106, %p107
      %p110 = scmp.ne.s32.totalorder %s93, %s109
      %p111 = scmp.eq.s32.totalorder %s17, 0
      %p112 = por %p110, %p111
      %p113 = scmp.le.s32.totalorder 1, %s11
      %p114 = scmp.lt.s32.totalorder %s11, 3
      %p115 = pnand %p113, %p114
      %p116 = pneg %p115
      // Predicated region
      $region9: #{forward.1} parent=5 // pred_check
        _
      $region10: #{forward.1} parent=5 // pred_check_branch
        %118 = sbr.rel (%p115) target = $region12
      $region11: #{forward.1} parent=5 // pred_region
        %s119 = ssub.s32 %s11, 1
        // Predicated region
        $region13: #{forward.1} parent=11 // pred_check
          %p120 = pneg %p58
        $region14: #{forward.1} parent=11 // pred_check_branch
          %122 = sbr.rel (%p120) target = $region16
        $region15: #{forward.1} parent=11 // pred_region
          %s124 = ssub.s32 1280, 1280
          %125 = vsyncadd [#allocation3], %s124
          %s126 = sshll.u32 [#allocation2], 4
          %s127 = int_to_ptr.vmem [resolvable:$true] %s126
          %132 = dma.hbm_to_vmem [thread:$0]  %s1, 1280, %s127, [#allocation3], 256, 256, 16
        $region16: #{forward.1} parent=11 // pred_fallthru
          _
        // Predicated region
        $region17: #{forward.1} parent=11 // pred_check
          %p133 = pneg %p79
        $region18: #{forward.1} parent=11 // pred_check_branch
          %135 = sbr.rel (%p133) target = $region20
        $region19: #{forward.1} parent=11 // pred_region
          %s137 = ssub.s32 4096, 4096
          %138 = vsyncadd [#allocation5], %s137
          %s139 = sshll.u32 [#allocation4], 4
          %s140 = int_to_ptr.vmem [resolvable:$true] %s139
          %145 = dma.hbm_to_vmem [thread:$0]  %s2, 4096, %s140, [#allocation5], 128, 128, 8
        $region20: #{forward.1} parent=11 // pred_fallthru
          _
      $region12: #{forward.1} parent=5 // pred_fallthru
        _
      %p146 = scmp.lt.s32.totalorder %s11, 2
      // Predicated region
      $region21: #{forward.1} parent=5 // pred_check
        %p147 = pneg %p146
      $region22: #{forward.1} parent=5 // pred_check_branch
        %149 = sbr.rel (%p147) target = $region24
      $region23: #{forward.1} parent=5 // pred_region
        // Predicated region
        $region25: #{forward.1} parent=23 // pred_check
          %p150 = pneg %p31
        $region26: #{forward.1} parent=23 // pred_check_branch
          %152 = sbr.rel (%p150) target = $region28
        $region27: #{forward.1} parent=23 // pred_region
          %p153 = scmp.lt.s32.totalorder %s11, 1
          %s154 = scalar_select %p153, %s11, 1
          %s155 = smul.addr %s154, 8
          %s156 = scalar_lea.vmem %s0, %s155
        $region28: #{forward.1} parent=23 // pred_fallthru
          _
      $region24: #{forward.1} parent=5 // pred_fallthru
        _
      %p157 = scmp.le.s32.totalorder 1, %s11
      %p158 = scmp.lt.s32.totalorder %s11, 3
      %p159 = pnand %p157, %p158
      %p160 = pneg %p159
      // Predicated region
      $region29: #{forward.1} parent=5 // pred_check
        _
      $region30: #{forward.1} parent=5 // pred_check_branch
        %162 = sbr.rel (%p159) target = $region32
      $region31: #{forward.1} parent=5 // pred_region
        %s163 = ssub.s32 %s11, 1
        // Predicated region
        $region33: #{forward.1} parent=31 // pred_check
          %p164 = pneg %p58
        $region34: #{forward.1} parent=31 // pred_check_branch
          %166 = sbr.rel (%p164) target = $region36
        $region35: #{forward.1} parent=31 // pred_region
          %167 = dma.done [#allocation3], 1280
        $region36: #{forward.1} parent=31 // pred_fallthru
          _
        // Predicated region
        $region37: #{forward.1} parent=31 // pred_check
          %p168 = pneg %p79
        $region38: #{forward.1} parent=31 // pred_check_branch
          %170 = sbr.rel (%p168) target = $region40
        $region39: #{forward.1} parent=31 // pred_region
          %171 = dma.done [#allocation5], 4096
        $region40: #{forward.1} parent=31 // pred_fallthru
          _
        %p172 = scmp.lt.s32.totalorder %s16, 1
        %s173 = scalar_select %p172, %s16, 1
        %s174 = smul.addr %s173, 8
        %s175 = scalar_lea.vmem %s0, %s174
        %p176 = pneg %p37
        %p177 = pneg %p34
        %p178 = pneg %p58
        %p179 = pneg %p55
        %p180 = pneg %p79
        %p181 = pneg %p76
        %p182 = pneg %p105
        %p183 = pneg %p102
        %p184 = scmp.lt.s32.totalorder %s16, 1
        %s185 = scalar_select %p184, %s16, 1
        %s186 = smul.addr %s185, 8
        %s187 = scalar_lea.vmem %s3, %s186
        %p188 = scmp.lt.s32.totalorder %s16, 1
        %s189 = scalar_select %p188, %s16, 1
        %s190 = smul.addr %s189, 8
        %s191 = scalar_lea.vmem %s0, %s190
        %p192 = scmp.lt.s32.totalorder %s16, 1
        %s193 = scalar_select %p192, %s16, 1
        %s194 = smul.addr %s193, 8
        %s195 = scalar_lea.vmem %s3, %s194
        %v196 = vld [vmem:[%s191] sm:$0xff]
        %v197 = vld [vmem:[#allocation2] sm:$0xff]
        %v198 = vld [vmem:[#allocation2 + $0x8] sm:$0xff]
        %v199 = vld [vmem:[#allocation2 + $0x10] sm:$0xff]
        %v200 = vld [vmem:[#allocation2 + $0x18] sm:$0xff]
        %v201 = vld [vmem:[#allocation2 + $0x20] sm:$0xff]
        %v202 = vld [vmem:[#allocation2 + $0x28] sm:$0xff]
        %v203 = vld [vmem:[#allocation2 + $0x30] sm:$0xff]
        %v204 = vld [vmem:[#allocation2 + $0x38] sm:$0xff]
        %v205 = vld [vmem:[#allocation2 + $0x40] sm:$0x1]
        %v206 = vld [vmem:[#allocation2 + $0x48] sm:$0x1]
        %vm207 = vcmask 269312
        %v209 = vsel %vm207, %v196, 0
        %vm211 = vcmask 1040384
        %v213 = vsel %vm211, %v205, 0
        %v216 = vsel %vm211, %v206, 0
        %218 = vmatprep.subr.mxu0 0.0
        %219 = vmatpush1.msra.mxu0 0.0
        %220 = vmatprep.subr.mxu0 0.0
        %221 = vmatpush1.msra.mxu0 0.0
        %222 = vmatprep.subr.mxu0 0.0
        %223 = vmatpush1.msra.mxu0 0.0
        %224 = vmatprep.subr.mxu0 0.0
        %225 = vmatpush1.msra.mxu0 0.0
        %226 = vmatprep.subr.mxu0 0.0
        %227 = vmatpush1.msra.mxu0 0.0
        %228 = vmatprep.subr.mxu0 0.0
        %229 = vmatpush1.msra.mxu0 0.0
        %230 = vmatprep.subr.mxu0 0.0
        %231 = vmatpush1.msra.mxu0 0.0
        %232 = vmatprep.subr.mxu0 0.0
        %233 = vmatpush1.msra.mxu0 0.0
        %234 = vmatprep.subr.mxu0 0.0
        %235 = vmatpush1.msra.mxu0 0.0
        %236 = vmatprep.subr.mxu0 0.0
        %237 = vmatpush1.msra.mxu0 0.0
        %238 = vmatprep.subr.mxu0 0.0
        %239 = vmatpush1.msra.mxu0 0.0
        %240 = vmatprep.subr.mxu0 %v216
        %241 = vmatpush1.msra.mxu0 %v213
        %242 = vmatprep.subr.mxu0 %v204
        %243 = vmatpush1.msra.mxu0 %v203
        %244 = vmatprep.subr.mxu0 %v202
        %245 = vmatpush1.msra.mxu0 %v201
        %246 = vmatprep.subr.mxu0 %v200
        %247 = vmatpush1.msra.mxu0 %v199
        %248 = vmatprep.subr.mxu0 %v198
        %249 = vmatpush1.msra.mxu0 %v197
        %250 = vmatprep.subr.mxu0 0.0
        %251 = vmatpush2.msra.mxu0 0.0
        %252 = vmatprep.subr.mxu0 0.0
        %253 = vmatpush2.msra.mxu0 0.0
        %254 = vmatprep.subr.mxu0 0.0
        %255 = vmatpush2.msra.mxu0 0.0
        %256 = vmatprep.subr.mxu0 0.0
        %257 = vmatpush2.msra.mxu0 0.0
        %258 = vmatprep.subr.mxu0 0.0
        %259 = vmatpush2.msra.mxu0 0.0
        %260 = vmatprep.subr.mxu0 0.0
        %261 = vmatpush2.msra.mxu0 0.0
        %262 = vmatprep.subr.mxu0 0.0
        %263 = vmatpush2.msra.mxu0 0.0
        %264 = vmatprep.subr.mxu0 0.0
        %265 = vmatpush2.msra.mxu0 0.0
        %266 = vmatprep.subr.mxu0 0.0
        %267 = vmatpush2.msra.mxu0 0.0
        %268 = vmatprep.subr.mxu0 0.0
        %269 = vmatpush2.msra.mxu0 0.0
        %270 = vmatprep.subr.mxu0 0.0
        %271 = vmatpush2.msra.mxu0 0.0
        %272 = vmatprep.subr.mxu0 0.0
        %273 = vmatpush2.msra.mxu0 0.0
        %274 = vmatprep.subr.mxu0 0.0
        %275 = vmatpush2.msra.mxu0 0.0
        %276 = vmatprep.subr.mxu0 0.0
        %277 = vmatpush2.msra.mxu0 0.0
        %278 = vmatprep.subr.mxu0 0.0
        %279 = vmatpush2.msra.mxu0 0.0
        %280 = vmatprep.subr.mxu0 0.0
        %281 = vmatpush2.msra.mxu0 0.0
        %282 = vmatprep.mubr.f32.mxu0 0.0
        %283 = vmatmul.mubr.f32.gmra.mxu0 %v209
        %v284 = vpop.f32.mrf.mxu0
        %v285 = vadd.f32 0.0, %v284
        %v286 = vpop.f32.mrf.mxu0
        %v287 = vadd.f32 0.0, %v286
        %288 = vdwg.mxu0
        %v289 = vlaneseq
        %v290 = vand.u32 %v289, 127
        %291 = vmin.xlane.f32.xlu0 %v285
        %v292 = vpop.xlane.xlu0 %291
        %vm293 = vcmp.le.f32.partialorder %v285, %v292
        %v294 = vsel %vm293, %v290, 128
        %v295 = vand.u32 %v294, 65535
        %v296 = vshra.s32 %v294, 16
        %v297 = vcvt.s32.f32 %v295
        %v298 = vcvt.s32.f32 %v296
        %299 = vmin.xlane.f32.xlu0 %v298
        %v300 = vpop.xlane.xlu0 %299
        %vm301 = vcmp.eq.f32.partialorder %v298, %v300
        %v302 = vsel %vm301, %v297, inf
        %303 = vmin.xlane.f32.xlu0 %v302
        %v304 = vpop.xlane.xlu0 %303
        %v305 = vcvt.f32.s32 %v304
        %v306 = vcvt.f32.s32 %v300
        %v307 = vshll.u32 %v306, 16
        %v308 = vadd.s32 %v307, %v305
        %vm309 = vcmp.eq.s32.totalorder %v290, %v308
        %v310 = vsel %vm309, 1, 0
        %v311 = vcvt.s32.f32 %v310
        %312 = vmin.xlane.f32.xlu0 %v287
        %v313 = vpop.xlane.xlu0 %312
        %vm314 = vcmp.le.f32.partialorder %v287, %v313
        %v315 = vsel %vm314, %v290, 128
        %v316 = vand.u32 %v315, 65535
        %v317 = vshra.s32 %v315, 16
        %v318 = vcvt.s32.f32 %v316
        %v319 = vcvt.s32.f32 %v317
        %320 = vmin.xlane.f32.xlu0 %v319
        %v321 = vpop.xlane.xlu0 %320
        %vm322 = vcmp.eq.f32.partialorder %v319, %v321
        %v323 = vsel %vm322, %v318, inf
        %324 = vmin.xlane.f32.xlu0 %v323
        %v325 = vpop.xlane.xlu0 %324
        %v326 = vcvt.f32.s32 %v325
        %v327 = vcvt.f32.s32 %v321
        %v328 = vshll.u32 %v327, 16
        %v329 = vadd.s32 %v328, %v326
        %vm330 = vcmp.eq.s32.totalorder %v290, %v329
        %v331 = vsel %vm330, 1, 0
        %v332 = vcvt.s32.f32 %v331
        %v333 = vld [vmem:[#allocation4] sm:$0xff]
        %v334 = vld [vmem:[#allocation4 + $0x8] sm:$0xff]
        %v335 = vld [vmem:[#allocation4 + $0x10] sm:$0xff]
        %v336 = vld [vmem:[#allocation4 + $0x18] sm:$0xff]
        %v337 = vld [vmem:[#allocation4 + $0x20] sm:$0xff]
        %v338 = vld [vmem:[#allocation4 + $0x28] sm:$0xff]
        %v339 = vld [vmem:[#allocation4 + $0x30] sm:$0xff]
        %v340 = vld [vmem:[#allocation4 + $0x38] sm:$0xff]
        %v341 = vld [vmem:[#allocation4 + $0x40] sm:$0xff]
        %v342 = vld [vmem:[#allocation4 + $0x48] sm:$0xff]
        %v343 = vld [vmem:[#allocation4 + $0x50] sm:$0xff]
        %v344 = vld [vmem:[#allocation4 + $0x58] sm:$0xff]
        %v345 = vld [vmem:[#allocation4 + $0x60] sm:$0xff]
        %v346 = vld [vmem:[#allocation4 + $0x68] sm:$0xff]
        %v347 = vld [vmem:[#allocation4 + $0x70] sm:$0xff]
        %v348 = vld [vmem:[#allocation4 + $0x78] sm:$0xff]
        %v349 = vld [vmem:[#allocation4 + $0x80] sm:$0xff]
        %v350 = vld [vmem:[#allocation4 + $0x88] sm:$0xff]
        %v351 = vld [vmem:[#allocation4 + $0x90] sm:$0xff]
        %v352 = vld [vmem:[#allocation4 + $0x98] sm:$0xff]
        %v353 = vld [vmem:[#allocation4 + $0xa0] sm:$0xff]
        %v354 = vld [vmem:[#allocation4 + $0xa8] sm:$0xff]
        %v355 = vld [vmem:[#allocation4 + $0xb0] sm:$0xff]
        %v356 = vld [vmem:[#allocation4 + $0xb8] sm:$0xff]
        %v357 = vld [vmem:[#allocation4 + $0xc0] sm:$0xff]
        %v358 = vld [vmem:[#allocation4 + $0xc8] sm:$0xff]
        %v359 = vld [vmem:[#allocation4 + $0xd0] sm:$0xff]
        %v360 = vld [vmem:[#allocation4 + $0xd8] sm:$0xff]
        %v361 = vld [vmem:[#allocation4 + $0xe0] sm:$0xff]
        %v362 = vld [vmem:[#allocation4 + $0xe8] sm:$0xff]
        %v363 = vld [vmem:[#allocation4 + $0xf0] sm:$0xff]
        %v364 = vld [vmem:[#allocation4 + $0xf8] sm:$0xff]
        %365 = vmatprep.subr.mxu0 0.0
        %366 = vmatpush1.msra.mxu0 %v348
        %367 = vmatprep.subr.mxu0 0.0
        %368 = vmatpush1.msra.mxu0 %v347
        %369 = vmatprep.subr.mxu0 0.0
        %370 = vmatpush1.msra.mxu0 %v346
        %371 = vmatprep.subr.mxu0 0.0
        %372 = vmatpush1.msra.mxu0 %v345
        %373 = vmatprep.subr.mxu0 0.0
        %374 = vmatpush1.msra.mxu0 %v344
        %375 = vmatprep.subr.mxu0 0.0
        %376 = vmatpush1.msra.mxu0 %v343
        %377 = vmatprep.subr.mxu0 0.0
        %378 = vmatpush1.msra.mxu0 %v342
        %379 = vmatprep.subr.mxu0 0.0
        %380 = vmatpush1.msra.mxu0 %v341
        %381 = vmatprep.subr.mxu0 0.0
        %382 = vmatpush1.msra.mxu0 %v340
        %383 = vmatprep.subr.mxu0 0.0
        %384 = vmatpush1.msra.mxu0 %v339
        %385 = vmatprep.subr.mxu0 0.0
        %386 = vmatpush1.msra.mxu0 %v338
        %387 = vmatprep.subr.mxu0 0.0
        %388 = vmatpush1.msra.mxu0 %v337
        %389 = vmatprep.subr.mxu0 0.0
        %390 = vmatpush1.msra.mxu0 %v336
        %391 = vmatprep.subr.mxu0 0.0
        %392 = vmatpush1.msra.mxu0 %v335
        %393 = vmatprep.subr.mxu0 0.0
        %394 = vmatpush1.msra.mxu0 %v334
        %395 = vmatprep.subr.mxu0 0.0
        %396 = vmatpush1.msra.mxu0 %v333
        %397 = vmatprep.subr.mxu0 0.0
        %398 = vmatpush2.msra.mxu0 %v364
        %399 = vmatprep.subr.mxu0 0.0
        %400 = vmatpush2.msra.mxu0 %v363
        %401 = vmatprep.subr.mxu0 0.0
        %402 = vmatpush2.msra.mxu0 %v362
        %403 = vmatprep.subr.mxu0 0.0
        %404 = vmatpush2.msra.mxu0 %v361
        %405 = vmatprep.subr.mxu0 0.0
        %406 = vmatpush2.msra.mxu0 %v360
        %407 = vmatprep.subr.mxu0 0.0
        %408 = vmatpush2.msra.mxu0 %v359
        %409 = vmatprep.subr.mxu0 0.0
        %410 = vmatpush2.msra.mxu0 %v358
        %411 = vmatprep.subr.mxu0 0.0
        %412 = vmatpush2.msra.mxu0 %v357
        %413 = vmatprep.subr.mxu0 0.0
        %414 = vmatpush2.msra.mxu0 %v356
        %415 = vmatprep.subr.mxu0 0.0
        %416 = vmatpush2.msra.mxu0 %v355
        %417 = vmatprep.subr.mxu0 0.0
        %418 = vmatpush2.msra.mxu0 %v354
        %419 = vmatprep.subr.mxu0 0.0
        %420 = vmatpush2.msra.mxu0 %v353
        %421 = vmatprep.subr.mxu0 0.0
        %422 = vmatpush2.msra.mxu0 %v352
        %423 = vmatprep.subr.mxu0 0.0
        %424 = vmatpush2.msra.mxu0 %v351
        %425 = vmatprep.subr.mxu0 0.0
        %426 = vmatpush2.msra.mxu0 %v350
        %427 = vmatprep.subr.mxu0 0.0
        %428 = vmatpush2.msra.mxu0 %v349
        %429 = vmatprep.mubr.f32.mxu0 %v332
        %430 = vmatmul.mubr.f32.gmra.mxu0 %v311
        %v431 = vpop.f32.mrf.mxu0
        %v432 = vadd.f32 0.0, %v431
        %v433 = vpop.f32.mrf.mxu0
        %434 = vdwg.mxu0
        %435 = vst [vmem:[%s195] sm:$0xff] %v432
        %p436 = scmp.lt.s32.totalorder %s16, 1
        %s437 = scalar_select %p436, %s16, 1
        %s438 = smul.addr %s437, 8
        %s439 = scalar_lea.vmem %s3, %s438
        // Predicated region
        $region41: #{forward.1} parent=31 // pred_check
          %p440 = pneg %p102
        $region42: #{forward.1} parent=31 // pred_check_branch
          %442 = sbr.rel (%p440) target = $region44
        $region43: #{forward.1} parent=31 // pred_region
          _
        $region44: #{forward.1} parent=31 // pred_fallthru
          _
      $region32: #{forward.1} parent=5 // pred_fallthru
        _
      %p443 = scmp.le.s32.totalorder 2, %s11
      // Predicated region
      $region45: #{forward.1} parent=5 // pred_check
        %p444 = pneg %p443
      $region46: #{forward.1} parent=5 // pred_check_branch
        %446 = sbr.rel (%p444) target = $region48
      $region47: #{forward.1} parent=5 // pred_region
        %s447 = ssub.s32 %s11, 2
        // Predicated region
        $region49: #{forward.1} parent=47 // pred_check
          %p448 = pneg %p108
        $region50: #{forward.1} parent=47 // pred_check_branch
          %450 = sbr.rel (%p448) target = $region52
        $region51: #{forward.1} parent=47 // pred_region
          %p451 = scmp.lt.s32.totalorder %s17, 1
          %s452 = scalar_select %p451, %s17, 1
          %s453 = smul.addr %s452, 8
          %s454 = scalar_lea.vmem %s3, %s453
        $region52: #{forward.1} parent=47 // pred_fallthru
          _
      $region48: #{forward.1} parent=5 // pred_fallthru
        _
    $region6: #{forward.1} parent=1 // loop_footer
      %s15 = sadd.s32 1, %s11
    $region7: #{forward.1} parent=1 // loop_footer_branch
      %10 = sbr.rel target = $region3
    $region8: #{forward.1} parent=1 // loop_exit
      _
    %455 = vsyncpa [#allocation3], 1
    %s456 = scalar_lea.sflag [#allocation3], 1
    %457 = vsyncpa %s456, 1
    %458 = vsyncpa [#allocation5], 1

</llo_original>
